<compile_context>
chip_gen: v5e
topology: v5e:2x2
jax: 0.10.0
libtpu: 0.0.40
codegen_flags: <defaults>
</compile_context>

<pallas_src>
import jax
import jax.numpy as jnp
from jax.experimental import pallas as pl
from jax.experimental.pallas import tpu as pltpu


def _pos_embed_kernel(w_ref, out_ref):
    # w_ref   : (1, tile_len)          VMEM tile of flattened positional rows
    # out_ref : (batch_tile, tile_len) output slab — broadcast down sublanes
    out_ref[...] = jnp.broadcast_to(w_ref[...], out_ref.shape)


def _divisors(n: int):
    out = set()
    i = 1
    while i * i <= n:
        if n % i == 0:
            out.add(i)
            out.add(n // i)
        i += 1
    return sorted(out)


def _choose_tiles(batch, total, itemsize, *, lane_block_bytes, out_block_bytes):
    # Lane tile: largest divisor of `total` that is a multiple of 128 and fits
    # the lane budget (lane-dense, unmasked stores). Fall back to the full row
    # (legal: block dim == full array dim) if no 128-multiple divisor exists.
    lane_divs = [d for d in _divisors(total) if d % 128 == 0]
    fitting = [d for d in lane_divs if d * itemsize <= lane_block_bytes]
    if fitting:
        tile_len = max(fitting)
    elif lane_divs:
        tile_len = min(lane_divs)
    else:
        tile_len = total  # not 128-divisible; masked stores but still correct

    # Batch tile: divisor of batch that is == batch or a multiple of 8
    # (sublane layout rule), largest whose output block fits the budget.
    cands = [d for d in _divisors(batch) if d == batch or d % 8 == 0]
    fitting = [d for d in cands if d * tile_len * itemsize <= out_block_bytes]
    batch_tile = max(fitting) if fitting else min(cands)
    return batch_tile, tile_len


def pos_embed(
    tokens: jax.Array,
    w_pos: jax.Array,
    *,
    lane_block_bytes: int = 2 * 1024 * 1024,
    out_block_bytes: int = 8 * 1024 * 1024,
) -> jax.Array:
    """Pallas implementation of PosEmbed.forward.

    tokens: int array [batch, seq]  (only its shape is used, matching PyTorch)
    w_pos:  float array [n_ctx, d_model]
    returns: float array [batch, seq, d_model] with out[b, s] = w_pos[s]
    """
    batch, seq_len = tokens.shape
    n_ctx, d_model = w_pos.shape
    assert seq_len <= n_ctx, "sequence length exceeds n_ctx"

    dtype = w_pos.dtype
    itemsize = jnp.dtype(dtype).itemsize
    total = seq_len * d_model

    # Lane-dense flattened view of the rows we actually need (read once).
    w_flat = w_pos[:seq_len].reshape(1, total)

    batch_tile, tile_len = _choose_tiles(
        batch, total, itemsize,
        lane_block_bytes=lane_block_bytes,
        out_block_bytes=out_block_bytes,
    )

    grid = (total // tile_len, batch // batch_tile)  # batch innermost

    out_flat = pl.pallas_call(
        _pos_embed_kernel,
        out_shape=jax.ShapeDtypeStruct((batch, total), dtype),
        grid_spec=pltpu.PrefetchScalarGridSpec(
            num_scalar_prefetch=0,
            grid=grid,
            in_specs=[
                # Depends only on the lane-tile index j: with batch innermost,
                # consecutive grid steps reuse the resident w_pos VMEM tile.
                pl.BlockSpec((1, tile_len), lambda j, b: (0, j)),
            ],
            out_specs=pl.BlockSpec(
                (batch_tile, tile_len), lambda j, b: (b, j)
            ),
        ),
        compiler_params=pltpu.CompilerParams(
            dimension_semantics=("parallel", "parallel"),
        ),
        cost_estimate=pl.CostEstimate(
            flops=0,
            transcendentals=0,
            bytes_accessed=(batch + 1) * total * itemsize,
        ),
    )(w_flat)

    return out_flat.reshape(batch, seq_len, d_model)


if __name__ == "__main__":
    # Small-config analogue of Config: n_ctx=16, d_model=32; batch=2, seq=8.
    n_ctx, d_model = 16, 32
    batch, seq_len = 2, 8
    init_range = 0.02

    key = jax.random.PRNGKey(0)
    k_w, k_tok = jax.random.split(key)

    # Deterministic parameter init: W_pos ~ N(0, init_range^2), like nn.init.normal_.
    w_pos = (init_range * jax.random.normal(k_w, (n_ctx, d_model))).astype(jnp.float32)
    tokens = jax.random.randint(k_tok, (batch, seq_len), 0, 100, dtype=jnp.int32)

    out = pos_embed(tokens, w_pos)
    out = jax.block_until_ready(out)

    # Reference: pure-JAX equivalent of the PyTorch forward.
    ref = w_pos[jnp.arange(seq_len)][None, :, :].repeat(batch, axis=0)
    assert out.shape == (batch, seq_len, d_model)
    assert out.dtype == w_pos.dtype
    assert jnp.allclose(out, ref), "Pallas output mismatch vs reference"

    print("KERNEL_OK")
</pallas_src>

<mosaic_0001>
module attributes {stable_mosaic.version = 11 : i64} {
  func.func @_pos_embed_kernel(%arg0: i32, %arg1: i32, %arg2: memref<1x256xf32, #tpu.memory_space<vmem>>, %arg3: memref<2x256xf32, #tpu.memory_space<vmem>>) attributes {dimension_semantics = [#tpu.dimension_semantics<parallel>, #tpu.dimension_semantics<parallel>], iteration_bounds = array<i64: 1, 1>, scalar_prefetch = 0 : i64, scratch_operands = 0 : i64, tpu.core_type = #tpu.core_type<tc>, window_params = [{transform_indices = @transform_0, window_bounds = array<i64: 1, 256>}, {transform_indices = @transform_1, window_bounds = array<i64: 2, 256>}]} {
    %c0 = arith.constant 0 : index
    %c0_0 = arith.constant 0 : index
    %0 = vector.load %arg2[%c0, %c0_0] : memref<1x256xf32, #tpu.memory_space<vmem>>, vector<1x256xf32>
    %1 = vector.shape_cast %0 : vector<1x256xf32> to vector<1x256xf32>
    %2 = vector.broadcast %1 : vector<1x256xf32> to vector<2x256xf32>
    %c0_1 = arith.constant 0 : index
    %c0_2 = arith.constant 0 : index
    %3 = vector.load %arg3[%c0_1, %c0_2] : memref<2x256xf32, #tpu.memory_space<vmem>>, vector<2x256xf32>
    tpu.vector_store %arg3[%c0_1, %c0_2], %2 {strides = array<i32>} : memref<2x256xf32, #tpu.memory_space<vmem>>, vector<2x256xf32>,
    return
  }
  func.func @transform_0(%arg0: i32, %arg1: i32) -> (i32, i32) {
    %c0_i32 = arith.constant 0 : i32
    %c0_i32_0 = arith.constant 0 : i32
    return %c0_i32, %arg0 : i32, i32
  }
  func.func @transform_1(%arg0: i32, %arg1: i32) -> (i32, i32) {
    %c0_i32 = arith.constant 0 : i32
    return %arg1, %arg0 : i32, i32
  }
}

</mosaic_0001>

<llo_original>
// kernel: tpu_custom_call.1
$region0: #{tpu_custom_call.1}
  #allocation0 [shape = 'u32[]', space=smem, size = 0x4, offset = 0x4, fixed_abs, tag = 'smem constant byte address 0x4 - core index']
  #allocation1 [shape = 'u32[72,128]{1,0:T(1,128)}', space=vmem, size = 0x9000, scoped, tag = 'internal scratch']
  %s0 = inlined_call_operand.hbm [shape: f32[1,256], index: 0, kind: input, shape index: {}]
  %s1 = inlined_call_operand.hbm [shape: f32[2,256], index: 1, kind: output, shape index: {}]
  %s2 = sld [smem:[#allocation0]]
  $region18: #{tpu_custom_call.1} parent=0
    _
  %s4 = ssub.s32 1, %s2
  %s5 = scalar_select 0, %s4, %s2
  $region1: #{tpu_custom_call.1} parent=0
    #allocation2 [shape = 'u8[1024]{0}', space=vmem, size = 0x400, scoped, tag = 'input window, operand 0, single buffered']
    #allocation3 [shape = 's32[1]{0}', space=sflag, size = 0x4, scoped, tag = 'scoped memory for tpu_custom_call.1']
    #allocation4 [shape = 's32[1]{0}', space=sflag, size = 0x4, scoped, tag = 'scoped memory for tpu_custom_call.1']
    #allocation5 [shape = 'u8[2048]{0}', space=vmem, size = 0x800, scoped, tag = 'output window, operand 0, single buffered']
    %6 = vsyncpa [#allocation3], 0
    %7 = vsyncpa [#allocation4], 0
    // Predicated region
    $region2: #{tpu_custom_call.1} parent=1 // pred_check
      _
    $region3: #{tpu_custom_call.1} parent=1 // pred_check_branch
      %9 = sbr.rel (0) target = $region5
    $region4: #{tpu_custom_call.1} parent=1 // pred_region
      %11 = vsyncadd [#allocation3], 0
      %s13 = sshll.u32 %s0, 4
      %s14 = int_to_ptr.hbm [resolvable:$true] %s13
      %s15 = sshll.u32 [#allocation2], 4
      %s16 = int_to_ptr.vmem [resolvable:$true] %s15
      %18 = dma.hbm_to_vmem [thread:$0]  %s14, 32, %s16, [#allocation3]
    $region5: #{tpu_custom_call.1} parent=1 // pred_fallthru
      _
    // Predicated region
    $region6: #{tpu_custom_call.1} parent=1 // pred_check
      _
    $region7: #{tpu_custom_call.1} parent=1 // pred_check_branch
      %20 = sbr.rel (0) target = $region9
    $region8: #{tpu_custom_call.1} parent=1 // pred_region
      %22 = dma.done [#allocation3], 32
    $region9: #{tpu_custom_call.1} parent=1 // pred_fallthru
      _
    %v23 = vld [vmem:[#allocation2] sm:$0x3]
    %v25 = vperm.slane %v23, 0
    %v26 = vperm.slane %v23, 1
    %v27 = vrot.slane %v26, 6
    %vm28 = vcmask 1041408
    %v29 = vsel %vm28, %v25, %v27
    %31 = vst [vmem:[#allocation5] sm:$0xf] %v29
    // Predicated region
    $region10: #{tpu_custom_call.1} parent=1 // pred_check
      _
    $region11: #{tpu_custom_call.1} parent=1 // pred_check_branch
      %33 = sbr.rel (0) target = $region13
    $region12: #{tpu_custom_call.1} parent=1 // pred_region
      %35 = vsyncadd [#allocation4], 0
      %s37 = sshll.u32 [#allocation5], 4
      %s38 = int_to_ptr.vmem [resolvable:$true] %s37
      %s39 = sshll.u32 %s1, 4
      %s40 = int_to_ptr.hbm [resolvable:$true] %s39
      %42 = dma.vmem_to_hbm [thread:$0]  %s38, 64, %s40, [#allocation4]
    $region13: #{tpu_custom_call.1} parent=1 // pred_fallthru
      _
    // Predicated region
    $region14: #{tpu_custom_call.1} parent=1 // pred_check
      _
    $region15: #{tpu_custom_call.1} parent=1 // pred_check_branch
      %44 = sbr.rel (0) target = $region17
    $region16: #{tpu_custom_call.1} parent=1 // pred_region
      %46 = dma.done [#allocation4], 64
    $region17: #{tpu_custom_call.1} parent=1 // pred_fallthru
      _
    %47 = vsyncpa [#allocation3], 1
    %48 = vsyncpa [#allocation4], 1

</llo_original>
